<compile_context>
chip_gen: v7x
topology: tpu7x:2x2x1
jax: 0.10.0
libtpu: 0.0.40
codegen_flags: <defaults>
</compile_context>

<pallas_src>
import functools
import math

import jax
import jax.numpy as jnp
from jax import lax
from jax.experimental import pallas as pl
from jax.experimental.pallas import tpu as pltpu

_NEG_INF = -1e30  # finite mask fill: exp underflows to 0, never NaN


def mha_fused_kernel(x_ref, wbig_ref, wp_ref, b_ref, cos_ref, sin_ref,
                     mask_ref, o_ref, cat_ref, *,
                     num_heads, head_size, embed_size, seq_len, batch_block):
    """One grid step = Bblk batch elements (M = Bblk*T rows), all heads."""
    H, K, D, T, Bb = num_heads, head_size, embed_size, seq_len, batch_block
    HK = H * K
    f32 = jnp.float32

    x = x_ref[...]                                           # (M, D)

    # --- single fused projection matmul for all heads / all streams ---------
    # Columns: [q_lin (HK) | k_lin (HK) | q_rot (HK) | k_rot (HK) | v (HD)].
    # 1/sqrt(K) is folded into the q columns at trace time.
    proj = jnp.dot(x, wbig_ref[...], preferred_element_type=f32)
    qk_lin = proj[:, :2 * HK]                                # (M, 2HK)
    qk_rot = proj[:, 2 * HK:4 * HK]                          # (M, 2HK)
    v = proj[:, 4 * HK:]                                     # (M, H*D)

    # --- RoPE: one width-2HK FMA; cos/sin deduped (T,K) and tiled in-kernel -
    cos = jnp.concatenate([cos_ref[...]] * (2 * H), axis=1)  # (T, 2HK)
    sin = jnp.concatenate([sin_ref[...]] * (2 * H), axis=1)  # (T, 2HK)
    if Bb > 1:
        cos = jnp.concatenate([cos] * Bb, axis=0)            # (M, 2HK)
        sin = jnp.concatenate([sin] * Bb, axis=0)
    qk = qk_lin * cos + qk_rot * sin
    q = qk[:, :HK]                                           # (M, HK)
    k = qk[:, HK:]                                           # (M, HK)

    # Precomputed additive mask: 0 where (same batch & causal), -1e30 else.
    mask_bias = mask_ref[...]                                # (M, M)

    # --- per-head attention; head outputs written to the VMEM concat buffer -
    # TODO(synk): K=8-wide lane slices are fine here; audit / go head-major
    # (pltpu.einshape) once head_size is realistic (>= 128).
    for h in range(H):
        qh = q[:, h * K:(h + 1) * K]                         # (M, K)
        kh = k[:, h * K:(h + 1) * K]                         # (M, K)
        s = lax.dot_general(qh, kh, (((1,), (1,)), ((), ())),
                            preferred_element_type=f32)      # (M, M)
        s = s + mask_bias
        m = jnp.max(s, axis=-1, keepdims=True)
        p = jnp.exp(s - m)
        denom = jnp.sum(p, axis=-1, keepdims=True)
        w = p / denom                                        # exact softmax
        cat_ref[:, h * D:(h + 1) * D] = jnp.dot(
            w, v[:, h * D:(h + 1) * D], preferred_element_type=f32)

    # --- single fused output projection (128-deep contraction) + bias -------
    out = jnp.dot(cat_ref[...], wp_ref[...],
                  preferred_element_type=f32) + b_ref[...]   # (M, D)
    o_ref[...] = out.astype(o_ref.dtype)


def _rope_tables(T, K):
    """De-duplicated half-split RoPE cos/sin tables, shape (T, K) each."""
    inv_freq = 1.0 / (10000.0 ** (jnp.arange(0, K, 2, dtype=jnp.float32) / K))
    pos = jnp.arange(T, dtype=jnp.float32)
    freqs = pos[:, None] * inv_freq[None, :]                 # (T, K/2)
    cos_k = jnp.concatenate([jnp.cos(freqs), jnp.cos(freqs)], -1)
    sin_k = jnp.concatenate([jnp.sin(freqs), jnp.sin(freqs)], -1)
    return cos_k, sin_k


def _mask_bias(Bblk, T):
    """Block-diagonal (same batch) causal additive mask for M=Bblk*T rows."""
    idx = jnp.arange(Bblk * T)
    same_batch = (idx[:, None] // T) == (idx[None, :] // T)
    causal = idx[None, :] <= idx[:, None]
    keep = jnp.logical_and(same_batch, causal)
    return jnp.where(keep, 0.0, _NEG_INF).astype(jnp.float32)


def _pick_batch_block(B, T):
    """Batch elements per grid step: feed the MXU with M = Bblk*T rows."""
    if B * T <= 512:              # small case: whole batch, one grid step
        return B
    bblk = max(1, min(B, 256 // max(T, 1)))
    while bblk > 1 and (B % bblk != 0 or (bblk * T) % 8 != 0):
        bblk -= 1
    if B % bblk != 0 or (bblk * T) % 8 != 0:
        return B
    return bblk


@jax.jit
def multi_head_attention(x, wq, wk, wv, w_proj, b_proj):
    """x: (B,T,D); wq/wk: (H,D,K); wv: (H,D,D); w_proj: (H*D,D); b_proj: (1,D)."""
    B, T, D = x.shape
    H, _, K = wq.shape
    half = K // 2
    scale = 1.0 / math.sqrt(K)

    # ---- trace-time weight prep (parameters only, not activations) ----------
    def stack(w):                     # (H, D, n) -> (D, H*n), head-major cols
        return jnp.transpose(w, (1, 0, 2)).reshape(D, -1)

    def rot_cols(w):                  # fold rotate_half into output columns
        return jnp.concatenate([-w[..., half:], w[..., :half]], axis=-1)

    wq_s = stack(wq) * scale          # 1/sqrt(K) folded in
    wqr_s = stack(rot_cols(wq)) * scale
    wk_s = stack(wk)
    wkr_s = stack(rot_cols(wk))
    wv_s = stack(wv)
    # One fused projection weight: [q_lin | k_lin | q_rot | k_rot | v].
    w_big = jnp.concatenate([wq_s, wk_s, wqr_s, wkr_s, wv_s], axis=1)

    cos_k, sin_k = _rope_tables(T, K)                 # (T, K) each, no dup

    Bblk = _pick_batch_block(B, T)
    M = Bblk * T
    grid = (B // Bblk,)
    mask_bias = _mask_bias(Bblk, T)                   # (M, M)

    x2 = x.reshape(B * T, D)                          # flat row-major rows

    kernel = functools.partial(mha_fused_kernel, num_heads=H, head_size=K,
                               embed_size=D, seq_len=T, batch_block=Bblk)

    out = pl.pallas_call(
        kernel,
        out_shape=jax.ShapeDtypeStruct((B * T, D), x.dtype),
        grid_spec=pltpu.PrefetchScalarGridSpec(
            num_scalar_prefetch=0,
            grid=grid,
            in_specs=[
                pl.BlockSpec((M, D), lambda g: (g, 0)),            # x rows
                pl.BlockSpec(w_big.shape, lambda g: (0, 0)),       # fused W
                pl.BlockSpec((H * D, D), lambda g: (0, 0)),        # w_proj
                pl.BlockSpec((1, D), lambda g: (0, 0)),            # bias
                pl.BlockSpec((T, K), lambda g: (0, 0)),            # cos (T,K)
                pl.BlockSpec((T, K), lambda g: (0, 0)),            # sin (T,K)
                pl.BlockSpec((M, M), lambda g: (0, 0)),            # mask bias
            ],
            out_specs=pl.BlockSpec((M, D), lambda g: (g, 0)),
            scratch_shapes=[pltpu.VMEM((M, H * D), jnp.float32)],  # concat buf
        ),
        compiler_params=pltpu.CompilerParams(
            dimension_semantics=("parallel",)),
    )(x2, w_big, w_proj, b_proj, cos_k, sin_k, mask_bias)
    return out.reshape(B, T, D)


def reference(x, wq, wk, wv, w_proj, b_proj):
    """Pure-JAX reference mirroring the PyTorch forward (unfused)."""
    B, T, D = x.shape
    H, _, K = wq.shape
    inv_freq = 1.0 / (10000.0 ** (jnp.arange(0, K, 2, dtype=jnp.float32) / K))
    pos = jnp.arange(T, dtype=jnp.float32)
    freqs = pos[:, None] * inv_freq[None, :]
    cos = jnp.concatenate([jnp.cos(freqs), jnp.cos(freqs)], -1)     # (T, K)
    sin = jnp.concatenate([jnp.sin(freqs), jnp.sin(freqs)], -1)     # (T, K)

    def rope(t):  # t: (B,T,K)
        t1, t2 = t[..., :K // 2], t[..., K // 2:]
        rot = jnp.concatenate([-t2, t1], axis=-1)
        return t * cos + rot * sin

    heads = []
    for h in range(H):
        q = rope(x @ wq[h])                          # (B,T,K)
        k = rope(x @ wk[h])                          # (B,T,K)
        v = x @ wv[h]                                # (B,T,D)
        s = jnp.einsum('btk,bsk->bts', q, k) / math.sqrt(K)
        mask = jnp.tril(jnp.ones((T, T), bool))
        s = jnp.where(mask, s, -jnp.inf)
        w = jax.nn.softmax(s, axis=-1)
        heads.append(jnp.einsum('bts,bsd->btd', w, v))
    cat = jnp.concatenate(heads, axis=-1)            # (B,T,H*D)
    return cat @ w_proj + b_proj


if __name__ == "__main__":
    B, T, D, H = 2, 8, 32, 4          # batch, context_window, embed, heads
    K = D // H                        # head_size

    key = jax.random.PRNGKey(0)
    keys = jax.random.split(key, 6)
    x = jax.random.normal(keys[0], (B, T, D), jnp.float32)

    # nn.Linear weights are (out, in); build and transpose into x@W orientation.
    wq_t = jax.random.normal(keys[1], (H, K, D), jnp.float32) / math.sqrt(D)
    wk_t = jax.random.normal(keys[2], (H, K, D), jnp.float32) / math.sqrt(D)
    wv_t = jax.random.normal(keys[3], (H, D, D), jnp.float32) / math.sqrt(D)
    wp_t = jax.random.normal(keys[4], (D, H * D), jnp.float32) / math.sqrt(H * D)
    b_p = jax.random.normal(keys[5], (D,), jnp.float32) * 0.01

    wq = jnp.transpose(wq_t, (0, 2, 1))     # (H, D, K)
    wk = jnp.transpose(wk_t, (0, 2, 1))     # (H, D, K)
    wv = jnp.transpose(wv_t, (0, 2, 1))     # (H, D, D)
    w_proj = wp_t.T                         # (H*D, D)
    b_proj = b_p.reshape(1, D)

    out = jax.block_until_ready(
        multi_head_attention(x, wq, wk, wv, w_proj, b_proj))
    ref = reference(x, wq, wk, wv, w_proj, b_p)

    assert out.shape == (B, T, D), out.shape
    # Exact softmax divide (no approx reciprocal) -> tight f32 tolerance; the
    # small margin covers MXU summation-order differences from the fused
    # projection / fused output-projection matmuls.
    assert jnp.allclose(out, ref, atol=2e-3, rtol=2e-3), \
        float(jnp.max(jnp.abs(out - ref)))
    print("KERNEL_OK")
</pallas_src>

<mosaic_0001>
module attributes {stable_mosaic.version = 11 : i64} {
  func.func @mha_fused_kernel(%arg0: i32, %arg1: memref<16x32xf32, #tpu.memory_space<vmem>>, %arg2: memref<32x256xf32, #tpu.memory_space<vmem>>, %arg3: memref<128x32xf32, #tpu.memory_space<vmem>>, %arg4: memref<1x32xf32, #tpu.memory_space<vmem>>, %arg5: memref<8x8xf32, #tpu.memory_space<vmem>>, %arg6: memref<8x8xf32, #tpu.memory_space<vmem>>, %arg7: memref<16x16xf32, #tpu.memory_space<vmem>>, %arg8: memref<16x32xf32, #tpu.memory_space<vmem>>, %arg9: memref<16x128xf32, #tpu.memory_space<vmem>>) attributes {dimension_semantics = [#tpu.dimension_semantics<parallel>], iteration_bounds = array<i64: 1>, scalar_prefetch = 0 : i64, scratch_operands = 1 : i64, tpu.core_type = #tpu.core_type<tc>, window_params = [{transform_indices = @transform_0, window_bounds = array<i64: 16, 32>}, {pipeline_mode = #tpu.pipeline_mode<synchronous>, transform_indices = @transform_1, window_bounds = array<i64: 32, 256>}, {pipeline_mode = #tpu.pipeline_mode<synchronous>, transform_indices = @transform_2, window_bounds = array<i64: 128, 32>}, {pipeline_mode = #tpu.pipeline_mode<synchronous>, transform_indices = @transform_3, window_bounds = array<i64: 1, 32>}, {pipeline_mode = #tpu.pipeline_mode<synchronous>, transform_indices = @transform_4, window_bounds = array<i64: 8, 8>}, {pipeline_mode = #tpu.pipeline_mode<synchronous>, transform_indices = @transform_5, window_bounds = array<i64: 8, 8>}, {pipeline_mode = #tpu.pipeline_mode<synchronous>, transform_indices = @transform_6, window_bounds = array<i64: 16, 16>}, {transform_indices = @transform_7, window_bounds = array<i64: 16, 32>}]} {
    %c0 = arith.constant 0 : index
    %c0_0 = arith.constant 0 : index
    %0 = vector.load %arg1[%c0, %c0_0] : memref<16x32xf32, #tpu.memory_space<vmem>>, vector<16x32xf32>
    %c0_1 = arith.constant 0 : index
    %c0_2 = arith.constant 0 : index
    %1 = vector.load %arg2[%c0_1, %c0_2] : memref<32x256xf32, #tpu.memory_space<vmem>>, vector<32x256xf32>
    %cst = arith.constant dense<0.000000e+00> : vector<16x256xf32>
    %2 = tpu.matmul %0, %1, %cst {dimension_numbers = #tpu.dot_dimension_numbers<[1], [0], [0], [1], [0, 0, 1, 1], [], []>} : vector<16x32xf32>, vector<32x256xf32>, vector<16x256xf32> -> vector<16x256xf32>
    %3 = vector.extract_strided_slice %2 {offsets = [0, 0], sizes = [16, 64], strides = [1, 1]} : vector<16x256xf32> to vector<16x64xf32>
    %4 = vector.extract_strided_slice %2 {offsets = [0, 64], sizes = [16, 64], strides = [1, 1]} : vector<16x256xf32> to vector<16x64xf32>
    %5 = vector.extract_strided_slice %2 {offsets = [0, 128], sizes = [16, 128], strides = [1, 1]} : vector<16x256xf32> to vector<16x128xf32>
    %c0_3 = arith.constant 0 : index
    %c0_4 = arith.constant 0 : index
    %6 = vector.load %arg5[%c0_3, %c0_4] : memref<8x8xf32, #tpu.memory_space<vmem>>, vector<8x8xf32>
    %7 = tpu.concatenate %6, %6, %6, %6, %6, %6, %6, %6 in 1 : vector<8x8xf32>, vector<8x8xf32>, vector<8x8xf32>, vector<8x8xf32>, vector<8x8xf32>, vector<8x8xf32>, vector<8x8xf32>, vector<8x8xf32> -> vector<8x64xf32>
    %c0_5 = arith.constant 0 : index
    %c0_6 = arith.constant 0 : index
    %8 = vector.load %arg6[%c0_5, %c0_6] : memref<8x8xf32, #tpu.memory_space<vmem>>, vector<8x8xf32>
    %9 = tpu.concatenate %8, %8, %8, %8, %8, %8, %8, %8 in 1 : vector<8x8xf32>, vector<8x8xf32>, vector<8x8xf32>, vector<8x8xf32>, vector<8x8xf32>, vector<8x8xf32>, vector<8x8xf32>, vector<8x8xf32> -> vector<8x64xf32>
    %10 = tpu.concatenate %7, %7 in 0 : vector<8x64xf32>, vector<8x64xf32> -> vector<16x64xf32>
    %11 = tpu.concatenate %9, %9 in 0 : vector<8x64xf32>, vector<8x64xf32> -> vector<16x64xf32>
    %12 = arith.mulf %3, %10 : vector<16x64xf32>
    %13 = arith.mulf %4, %11 : vector<16x64xf32>
    %14 = arith.addf %12, %13 : vector<16x64xf32>
    %15 = vector.extract_strided_slice %14 {offsets = [0, 0], sizes = [16, 32], strides = [1, 1]} : vector<16x64xf32> to vector<16x32xf32>
    %16 = vector.extract_strided_slice %14 {offsets = [0, 32], sizes = [16, 32], strides = [1, 1]} : vector<16x64xf32> to vector<16x32xf32>
    %c0_7 = arith.constant 0 : index
    %c0_8 = arith.constant 0 : index
    %17 = vector.load %arg7[%c0_7, %c0_8] : memref<16x16xf32, #tpu.memory_space<vmem>>, vector<16x16xf32>
    %18 = vector.extract_strided_slice %15 {offsets = [0, 0], sizes = [16, 8], strides = [1, 1]} : vector<16x32xf32> to vector<16x8xf32>
    %19 = vector.extract_strided_slice %16 {offsets = [0, 0], sizes = [16, 8], strides = [1, 1]} : vector<16x32xf32> to vector<16x8xf32>
    %cst_9 = arith.constant dense<0.000000e+00> : vector<16x16xf32>
    %20 = tpu.matmul %18, %19, %cst_9 {dimension_numbers = #tpu.dot_dimension_numbers<[1], [1], [0], [0], [0, 0, 1, 0], [], []>} : vector<16x8xf32>, vector<16x8xf32>, vector<16x16xf32> -> vector<16x16xf32>
    %21 = arith.addf %20, %17 : vector<16x16xf32>
    %cst_10 = arith.constant dense<0xFF800000> : vector<16xf32>
    %22 = vector.multi_reduction <maximumf>, %21, %cst_10 [1] : vector<16x16xf32> to vector<16xf32>
    %23 = vector.shape_cast %22 : vector<16xf32> to vector<16x1xf32>
    %24 = vector.broadcast %23 : vector<16x1xf32> to vector<16x16xf32>
    %25 = arith.subf %21, %24 : vector<16x16xf32>
    %26 = math.exp %25 : vector<16x16xf32>
    %cst_11 = arith.constant dense<0.000000e+00> : vector<16xf32>
    %27 = vector.multi_reduction <add>, %26, %cst_11 [1] : vector<16x16xf32> to vector<16xf32>
    %28 = vector.shape_cast %27 : vector<16xf32> to vector<16x1xf32>
    %29 = vector.broadcast %28 : vector<16x1xf32> to vector<16x16xf32>
    %30 = arith.divf %26, %29 : vector<16x16xf32>
    %31 = vector.extract_strided_slice %5 {offsets = [0, 0], sizes = [16, 32], strides = [1, 1]} : vector<16x128xf32> to vector<16x32xf32>
    %cst_12 = arith.constant dense<0.000000e+00> : vector<16x32xf32>
    %32 = tpu.matmul %30, %31, %cst_12 {dimension_numbers = #tpu.dot_dimension_numbers<[1], [0], [0], [1], [0, 0, 1, 1], [], []>} : vector<16x16xf32>, vector<16x32xf32>, vector<16x32xf32> -> vector<16x32xf32>
    %c0_13 = arith.constant 0 : index
    %c0_14 = arith.constant 0 : index
    %33 = vector.load %arg9[%c0_13, %c0_14] : memref<16x128xf32, #tpu.memory_space<vmem>>, vector<16x32xf32>
    tpu.vector_store %arg9[%c0_13, %c0_14], %32 {strides = array<i32>} : memref<16x128xf32, #tpu.memory_space<vmem>>, vector<16x32xf32>,
    %34 = vector.extract_strided_slice %15 {offsets = [0, 8], sizes = [16, 8], strides = [1, 1]} : vector<16x32xf32> to vector<16x8xf32>
    %35 = vector.extract_strided_slice %16 {offsets = [0, 8], sizes = [16, 8], strides = [1, 1]} : vector<16x32xf32> to vector<16x8xf32>
    %cst_15 = arith.constant dense<0.000000e+00> : vector<16x16xf32>
    %36 = tpu.matmul %34, %35, %cst_15 {dimension_numbers = #tpu.dot_dimension_numbers<[1], [1], [0], [0], [0, 0, 1, 0], [], []>} : vector<16x8xf32>, vector<16x8xf32>, vector<16x16xf32> -> vector<16x16xf32>
    %37 = arith.addf %36, %17 : vector<16x16xf32>
    %cst_16 = arith.constant dense<0xFF800000> : vector<16xf32>
    %38 = vector.multi_reduction <maximumf>, %37, %cst_16 [1] : vector<16x16xf32> to vector<16xf32>
    %39 = vector.shape_cast %38 : vector<16xf32> to vector<16x1xf32>
    %40 = vector.broadcast %39 : vector<16x1xf32> to vector<16x16xf32>
    %41 = arith.subf %37, %40 : vector<16x16xf32>
    %42 = math.exp %41 : vector<16x16xf32>
    %cst_17 = arith.constant dense<0.000000e+00> : vector<16xf32>
    %43 = vector.multi_reduction <add>, %42, %cst_17 [1] : vector<16x16xf32> to vector<16xf32>
    %44 = vector.shape_cast %43 : vector<16xf32> to vector<16x1xf32>
    %45 = vector.broadcast %44 : vector<16x1xf32> to vector<16x16xf32>
    %46 = arith.divf %42, %45 : vector<16x16xf32>
    %47 = vector.extract_strided_slice %5 {offsets = [0, 32], sizes = [16, 32], strides = [1, 1]} : vector<16x128xf32> to vector<16x32xf32>
    %cst_18 = arith.constant dense<0.000000e+00> : vector<16x32xf32>
    %48 = tpu.matmul %46, %47, %cst_18 {dimension_numbers = #tpu.dot_dimension_numbers<[1], [0], [0], [1], [0, 0, 1, 1], [], []>} : vector<16x16xf32>, vector<16x32xf32>, vector<16x32xf32> -> vector<16x32xf32>
    %c0_19 = arith.constant 0 : index
    %c32 = arith.constant 32 : index
    %49 = vector.load %arg9[%c0_19, %c32] : memref<16x128xf32, #tpu.memory_space<vmem>>, vector<16x32xf32>
    tpu.vector_store %arg9[%c0_19, %c32], %48 {strides = array<i32>} : memref<16x128xf32, #tpu.memory_space<vmem>>, vector<16x32xf32>,
    %50 = vector.extract_strided_slice %15 {offsets = [0, 16], sizes = [16, 8], strides = [1, 1]} : vector<16x32xf32> to vector<16x8xf32>
    %51 = vector.extract_strided_slice %16 {offsets = [0, 16], sizes = [16, 8], strides = [1, 1]} : vector<16x32xf32> to vector<16x8xf32>
    %cst_20 = arith.constant dense<0.000000e+00> : vector<16x16xf32>
    %52 = tpu.matmul %50, %51, %cst_20 {dimension_numbers = #tpu.dot_dimension_numbers<[1], [1], [0], [0], [0, 0, 1, 0], [], []>} : vector<16x8xf32>, vector<16x8xf32>, vector<16x16xf32> -> vector<16x16xf32>
    %53 = arith.addf %52, %17 : vector<16x16xf32>
    %cst_21 = arith.constant dense<0xFF800000> : vector<16xf32>
    %54 = vector.multi_reduction <maximumf>, %53, %cst_21 [1] : vector<16x16xf32> to vector<16xf32>
    %55 = vector.shape_cast %54 : vector<16xf32> to vector<16x1xf32>
    %56 = vector.broadcast %55 : vector<16x1xf32> to vector<16x16xf32>
    %57 = arith.subf %53, %56 : vector<16x16xf32>
    %58 = math.exp %57 : vector<16x16xf32>
    %cst_22 = arith.constant dense<0.000000e+00> : vector<16xf32>
    %59 = vector.multi_reduction <add>, %58, %cst_22 [1] : vector<16x16xf32> to vector<16xf32>
    %60 = vector.shape_cast %59 : vector<16xf32> to vector<16x1xf32>
    %61 = vector.broadcast %60 : vector<16x1xf32> to vector<16x16xf32>
    %62 = arith.divf %58, %61 : vector<16x16xf32>
    %63 = vector.extract_strided_slice %5 {offsets = [0, 64], sizes = [16, 32], strides = [1, 1]} : vector<16x128xf32> to vector<16x32xf32>
    %cst_23 = arith.constant dense<0.000000e+00> : vector<16x32xf32>
    %64 = tpu.matmul %62, %63, %cst_23 {dimension_numbers = #tpu.dot_dimension_numbers<[1], [0], [0], [1], [0, 0, 1, 1], [], []>} : vector<16x16xf32>, vector<16x32xf32>, vector<16x32xf32> -> vector<16x32xf32>
    %c0_24 = arith.constant 0 : index
    %c64 = arith.constant 64 : index
    %65 = vector.load %arg9[%c0_24, %c64] : memref<16x128xf32, #tpu.memory_space<vmem>>, vector<16x32xf32>
    tpu.vector_store %arg9[%c0_24, %c64], %64 {strides = array<i32>} : memref<16x128xf32, #tpu.memory_space<vmem>>, vector<16x32xf32>,
    %66 = vector.extract_strided_slice %15 {offsets = [0, 24], sizes = [16, 8], strides = [1, 1]} : vector<16x32xf32> to vector<16x8xf32>
    %67 = vector.extract_strided_slice %16 {offsets = [0, 24], sizes = [16, 8], strides = [1, 1]} : vector<16x32xf32> to vector<16x8xf32>
    %cst_25 = arith.constant dense<0.000000e+00> : vector<16x16xf32>
    %68 = tpu.matmul %66, %67, %cst_25 {dimension_numbers = #tpu.dot_dimension_numbers<[1], [1], [0], [0], [0, 0, 1, 0], [], []>} : vector<16x8xf32>, vector<16x8xf32>, vector<16x16xf32> -> vector<16x16xf32>
    %69 = arith.addf %68, %17 : vector<16x16xf32>
    %cst_26 = arith.constant dense<0xFF800000> : vector<16xf32>
    %70 = vector.multi_reduction <maximumf>, %69, %cst_26 [1] : vector<16x16xf32> to vector<16xf32>
    %71 = vector.shape_cast %70 : vector<16xf32> to vector<16x1xf32>
    %72 = vector.broadcast %71 : vector<16x1xf32> to vector<16x16xf32>
    %73 = arith.subf %69, %72 : vector<16x16xf32>
    %74 = math.exp %73 : vector<16x16xf32>
    %cst_27 = arith.constant dense<0.000000e+00> : vector<16xf32>
    %75 = vector.multi_reduction <add>, %74, %cst_27 [1] : vector<16x16xf32> to vector<16xf32>
    %76 = vector.shape_cast %75 : vector<16xf32> to vector<16x1xf32>
    %77 = vector.broadcast %76 : vector<16x1xf32> to vector<16x16xf32>
    %78 = arith.divf %74, %77 : vector<16x16xf32>
    %79 = vector.extract_strided_slice %5 {offsets = [0, 96], sizes = [16, 32], strides = [1, 1]} : vector<16x128xf32> to vector<16x32xf32>
    %cst_28 = arith.constant dense<0.000000e+00> : vector<16x32xf32>
    %80 = tpu.matmul %78, %79, %cst_28 {dimension_numbers = #tpu.dot_dimension_numbers<[1], [0], [0], [1], [0, 0, 1, 1], [], []>} : vector<16x16xf32>, vector<16x32xf32>, vector<16x32xf32> -> vector<16x32xf32>
    %c0_29 = arith.constant 0 : index
    %c96 = arith.constant 96 : index
    %81 = vector.load %arg9[%c0_29, %c96] : memref<16x128xf32, #tpu.memory_space<vmem>>, vector<16x32xf32>
    tpu.vector_store %arg9[%c0_29, %c96], %80 {strides = array<i32>} : memref<16x128xf32, #tpu.memory_space<vmem>>, vector<16x32xf32>,
    %c0_30 = arith.constant 0 : index
    %c0_31 = arith.constant 0 : index
    %82 = vector.load %arg9[%c0_30, %c0_31] : memref<16x128xf32, #tpu.memory_space<vmem>>, vector<16x128xf32>
    %c0_32 = arith.constant 0 : index
    %c0_33 = arith.constant 0 : index
    %83 = vector.load %arg3[%c0_32, %c0_33] : memref<128x32xf32, #tpu.memory_space<vmem>>, vector<128x32xf32>
    %cst_34 = arith.constant dense<0.000000e+00> : vector<16x32xf32>
    %84 = tpu.matmul %82, %83, %cst_34 {dimension_numbers = #tpu.dot_dimension_numbers<[1], [0], [0], [1], [0, 0, 1, 1], [], []>} : vector<16x128xf32>, vector<128x32xf32>, vector<16x32xf32> -> vector<16x32xf32>
    %c0_35 = arith.constant 0 : index
    %c0_36 = arith.constant 0 : index
    %85 = vector.load %arg4[%c0_35, %c0_36] : memref<1x32xf32, #tpu.memory_space<vmem>>, vector<1x32xf32>
    %86 = vector.broadcast %85 : vector<1x32xf32> to vector<16x32xf32>
    %87 = arith.addf %84, %86 : vector<16x32xf32>
    %c0_37 = arith.constant 0 : index
    %c0_38 = arith.constant 0 : index
    %88 = vector.load %arg8[%c0_37, %c0_38] : memref<16x32xf32, #tpu.memory_space<vmem>>, vector<16x32xf32>
    tpu.vector_store %arg8[%c0_37, %c0_38], %87 {strides = array<i32>} : memref<16x32xf32, #tpu.memory_space<vmem>>, vector<16x32xf32>,
    return
  }
  func.func @transform_0(%arg0: i32) -> (i32, i32) {
    %c0_i32 = arith.constant 0 : i32
    %c0_i32_0 = arith.constant 0 : i32
    return %arg0, %c0_i32 : i32, i32
  }
  func.func @transform_1(%arg0: i32) -> (i32, i32) {
    %c0_i32 = arith.constant 0 : i32
    %c0_i32_0 = arith.constant 0 : i32
    %c0_i32_1 = arith.constant 0 : i32
    return %c0_i32, %c0_i32_0 : i32, i32
  }
  func.func @transform_2(%arg0: i32) -> (i32, i32) {
    %c0_i32 = arith.constant 0 : i32
    %c0_i32_0 = arith.constant 0 : i32
    %c0_i32_1 = arith.constant 0 : i32
    return %c0_i32, %c0_i32_0 : i32, i32
  }
  func.func @transform_3(%arg0: i32) -> (i32, i32) {
    %c0_i32 = arith.constant 0 : i32
    %c0_i32_0 = arith.constant 0 : i32
    %c0_i32_1 = arith.constant 0 : i32
    return %c0_i32, %c0_i32_0 : i32, i32
  }
  func.func @transform_4(%arg0: i32) -> (i32, i32) {
    %c0_i32 = arith.constant 0 : i32
    %c0_i32_0 = arith.constant 0 : i32
    %c0_i32_1 = arith.constant 0 : i32
    return %c0_i32, %c0_i32_0 : i32, i32
  }
  func.func @transform_5(%arg0: i32) -> (i32, i32) {
    %c0_i32 = arith.constant 0 : i32
    %c0_i32_0 = arith.constant 0 : i32
    %c0_i32_1 = arith.constant 0 : i32
    return %c0_i32, %c0_i32_0 : i32, i32
  }
  func.func @transform_6(%arg0: i32) -> (i32, i32) {
    %c0_i32 = arith.constant 0 : i32
    %c0_i32_0 = arith.constant 0 : i32
    %c0_i32_1 = arith.constant 0 : i32
    return %c0_i32, %c0_i32_0 : i32, i32
  }
  func.func @transform_7(%arg0: i32) -> (i32, i32) {
    %c0_i32 = arith.constant 0 : i32
    %c0_i32_0 = arith.constant 0 : i32
    return %arg0, %c0_i32 : i32, i32
  }
}

</mosaic_0001>

<llo_original>
// kernel: multi_head_attention.1
$region0: #{multi_head_attention.1}
  #allocation0 [shape = 'u32[]', space=smem, size = 0x4, offset = 0x4, fixed_abs, tag = 'smem constant byte address 0x4 - core index']
  #allocation1 [shape = 'u32[144,128]{1,0:T(1,128)}', space=vmem, size = 0x12000, scoped, tag = 'internal scratch']
  #allocation2 [shape = 'f32[16,128]{1,0:T(8,128)}', space=vmem, size = 0x2000, scoped, tag = 'scratch operand']
  %s0 = inlined_call_operand.vmem [shape: f32[16,32], index: 0, kind: input, shape index: {}]
  %s1 = inlined_call_operand.vmem [shape: f32[32,256], index: 1, kind: input, shape index: {}]
  %s2 = inlined_call_operand.vmem [shape: f32[128,32], index: 2, kind: input, shape index: {}]
  %s3 = inlined_call_operand.vmem [shape: f32[1,32], index: 3, kind: input, shape index: {}]
  %s4 = inlined_call_operand.vmem [shape: f32[8,8], index: 4, kind: input, shape index: {}]
  %s5 = inlined_call_operand.vmem [shape: f32[8,8], index: 5, kind: input, shape index: {}]
  %s6 = inlined_call_operand.vmem [shape: f32[16,16], index: 6, kind: input, shape index: {}]
  %s7 = inlined_call_operand.hbm [shape: f32[16,32], index: 7, kind: output, shape index: {}]
  %s8 = sld [smem:[#allocation0]]
  $region38: #{multi_head_attention.1} parent=0
    _
  %s10 = ssub.s32 1, %s8
  %s11 = scalar_select 0, %s10, %s8
  $region1: #{multi_head_attention.1} parent=0
    #allocation3 [shape = 'u8[8192]{0}', space=vmem, size = 0x2000, scoped, tag = 'output window, operand 0, single buffered']
    #allocation4 [shape = 's32[1]{0}', space=sflag, size = 0x4, scoped, tag = 'scoped memory for multi_head_attention.1']
    %12 = vsyncpa [#allocation4], 0
    // Predicated region
    $region2: #{multi_head_attention.1} parent=1 // pred_check
      _
    $region3: #{multi_head_attention.1} parent=1 // pred_check_branch
      %14 = sbr.rel (0) target = $region5
    $region4: #{multi_head_attention.1} parent=1 // pred_region
      _
    $region5: #{multi_head_attention.1} parent=1 // pred_fallthru
      _
    // Predicated region
    $region6: #{multi_head_attention.1} parent=1 // pred_check
      _
    $region7: #{multi_head_attention.1} parent=1 // pred_check_branch
      %16 = sbr.rel (0) target = $region9
    $region8: #{multi_head_attention.1} parent=1 // pred_region
      _
    $region9: #{multi_head_attention.1} parent=1 // pred_fallthru
      _
    // Predicated region
    $region10: #{multi_head_attention.1} parent=1 // pred_check
      _
    $region11: #{multi_head_attention.1} parent=1 // pred_check_branch
      %18 = sbr.rel (0) target = $region13
    $region12: #{multi_head_attention.1} parent=1 // pred_region
      _
    $region13: #{multi_head_attention.1} parent=1 // pred_fallthru
      _
    // Predicated region
    $region14: #{multi_head_attention.1} parent=1 // pred_check
      _
    $region15: #{multi_head_attention.1} parent=1 // pred_check_branch
      %20 = sbr.rel (0) target = $region17
    $region16: #{multi_head_attention.1} parent=1 // pred_region
      _
    $region17: #{multi_head_attention.1} parent=1 // pred_fallthru
      _
    // Predicated region
    $region18: #{multi_head_attention.1} parent=1 // pred_check
      _
    $region19: #{multi_head_attention.1} parent=1 // pred_check_branch
      %22 = sbr.rel (0) target = $region21
    $region20: #{multi_head_attention.1} parent=1 // pred_region
      _
    $region21: #{multi_head_attention.1} parent=1 // pred_fallthru
      _
    // Predicated region
    $region22: #{multi_head_attention.1} parent=1 // pred_check
      _
    $region23: #{multi_head_attention.1} parent=1 // pred_check_branch
      %24 = sbr.rel (0) target = $region25
    $region24: #{multi_head_attention.1} parent=1 // pred_region
      _
    $region25: #{multi_head_attention.1} parent=1 // pred_fallthru
      _
    // Predicated region
    $region26: #{multi_head_attention.1} parent=1 // pred_check
      _
    $region27: #{multi_head_attention.1} parent=1 // pred_check_branch
      %26 = sbr.rel (0) target = $region29
    $region28: #{multi_head_attention.1} parent=1 // pred_region
      _
    $region29: #{multi_head_attention.1} parent=1 // pred_fallthru
      _
    %v27 = vld [vmem:[%s0] sm:$0xff]
    %v28 = vld [vmem:[%s0 + $0x8] sm:$0xff]
    %v29 = vld [vmem:[%s1] sm:$0xff]
    %v30 = vld [vmem:[%s1 + $0x8] sm:$0xff]
    %v31 = vld [vmem:[%s1 + $0x10] sm:$0xff]
    %v32 = vld [vmem:[%s1 + $0x18] sm:$0xff]
    %v33 = vld [vmem:[%s1 + $0x20] sm:$0xff]
    %v34 = vld [vmem:[%s1 + $0x28] sm:$0xff]
    %v35 = vld [vmem:[%s1 + $0x30] sm:$0xff]
    %v36 = vld [vmem:[%s1 + $0x38] sm:$0xff]
    %vm37 = vcmask 261120
    %v39 = vsel %vm37, %v27, 0
    %v42 = vsel %vm37, %v28, 0
    %44 = vmatprep.subr.mxu0 %v30
    %45 = vmatpush1.msra.mxu0 %v29
    %46 = vmatprep.subr.mxu0 %v32
    %47 = vmatpush1.msra.mxu0 %v31
    %48 = vmatprep.subr.mxu0 %v34
    %49 = vmatpush1.msra.mxu0 %v33
    %50 = vmatprep.subr.mxu0 %v36
    %51 = vmatpush1.msra.mxu0 %v35
    %52 = vmatprep.subr.mxu0 0.0
    %53 = vmatpush1.msra.mxu0 0.0
    %54 = vmatprep.subr.mxu0 0.0
    %55 = vmatpush1.msra.mxu0 0.0
    %56 = vmatprep.subr.mxu0 0.0
    %57 = vmatpush1.msra.mxu0 0.0
    %58 = vmatprep.subr.mxu0 0.0
    %59 = vmatpush1.msra.mxu0 0.0
    %60 = vmatprep.subr.mxu0 0.0
    %61 = vmatpush1.msra.mxu0 0.0
    %62 = vmatprep.subr.mxu0 0.0
    %63 = vmatpush1.msra.mxu0 0.0
    %64 = vmatprep.subr.mxu0 0.0
    %65 = vmatpush1.msra.mxu0 0.0
    %66 = vmatprep.subr.mxu0 0.0
    %67 = vmatpush1.msra.mxu0 0.0
    %68 = vmatprep.subr.mxu0 0.0
    %69 = vmatpush1.msra.mxu0 0.0
    %70 = vmatprep.subr.mxu0 0.0
    %71 = vmatpush1.msra.mxu0 0.0
    %72 = vmatprep.subr.mxu0 0.0
    %73 = vmatpush1.msra.mxu0 0.0
    %74 = vmatprep.subr.mxu0 0.0
    %75 = vmatpush1.msra.mxu0 0.0
    %76 = vmatprep.subr.mxu0 0.0
    %77 = vmatpush1.msra.mxu0 0.0
    %78 = vmatprep.subr.mxu0 0.0
    %79 = vmatpush1.msra.mxu0 0.0
    %80 = vmatprep.subr.mxu0 0.0
    %81 = vmatpush1.msra.mxu0 0.0
    %82 = vmatprep.subr.mxu0 0.0
    %83 = vmatpush1.msra.mxu0 0.0
    %84 = vmatprep.subr.mxu0 0.0
    %85 = vmatpush1.msra.mxu0 0.0
    %86 = vmatprep.subr.mxu0 0.0
    %87 = vmatpush1.msra.mxu0 0.0
    %88 = vmatprep.subr.mxu0 0.0
    %89 = vmatpush1.msra.mxu0 0.0
    %90 = vmatprep.subr.mxu0 0.0
    %91 = vmatpush1.msra.mxu0 0.0
    %92 = vmatprep.subr.mxu0 0.0
    %93 = vmatpush1.msra.mxu0 0.0
    %94 = vmatprep.subr.mxu0 0.0
    %95 = vmatpush1.msra.mxu0 0.0
    %96 = vmatprep.subr.mxu0 0.0
    %97 = vmatpush1.msra.mxu0 0.0
    %98 = vmatprep.subr.mxu0 0.0
    %99 = vmatpush1.msra.mxu0 0.0
    %100 = vmatprep.subr.mxu0 0.0
    %101 = vmatpush1.msra.mxu0 0.0
    %102 = vmatprep.subr.mxu0 0.0
    %103 = vmatpush1.msra.mxu0 0.0
    %104 = vmatprep.subr.mxu0 0.0
    %105 = vmatpush1.msra.mxu0 0.0
    %106 = vmatprep.subr.mxu0 0.0
    %107 = vmatpush1.msra.mxu0 0.0
    %108 = vmatprep.mubr.f32.mxu0 0.0
    %109 = vmatmul.mubr.f32.gmra.mrb[0].mxu0 %v39
    %v110 = vpop.f32.mrb[0].mxu0
    %v111 = vadd.f32 0.0, %v110
    %v112 = vpop.f32.mrb[0].mxu0
    %v113 = vadd.f32 0.0, %v112
    %114 = vmatprep.mubr.f32.mxu0 0.0
    %115 = vmatmul.mubr.f32.gmra.mrb[0].mxu0 %v42
    %v116 = vpop.f32.mrb[0].mxu0
    %v117 = vadd.f32 0.0, %v116
    %v118 = vpop.f32.mrb[0].mxu0
    %v119 = vadd.f32 0.0, %v118
    %120 = vdwg.mxu0
    %v121 = vld [vmem:[%s4] sm:$0xff]
    %123 = vrot.lane.b32.xlu0 %v121, 8
    %v124 = vpop.permute.xlu0 %123
    %126 = vrot.lane.b32.xlu0 %v121, 16
    %v127 = vpop.permute.xlu0 %126
    %129 = vrot.lane.b32.xlu0 %v121, 24
    %v130 = vpop.permute.xlu0 %129
    %132 = vrot.lane.b32.xlu0 %v121, 32
    %v133 = vpop.permute.xlu0 %132
    %135 = vrot.lane.b32.xlu0 %v121, 40
    %v136 = vpop.permute.xlu0 %135
    %138 = vrot.lane.b32.xlu0 %v121, 48
    %v139 = vpop.permute.xlu0 %138
    %141 = vrot.lane.b32.xlu0 %v121, 56
    %v142 = vpop.permute.xlu0 %141
    %vm144 = vcmask 64512
    %v145 = vsel %vm144, %v121, %v124
    %vm146 = vcmask 130048
    %v147 = vsel %vm146, %v145, %v127
    %vm148 = vcmask 195584
    %v149 = vsel %vm148, %v147, %v130
    %v150 = vsel %vm37, %v149, %v133
    %vm151 = vcmask 326656
    %v152 = vsel %vm151, %v150, %v136
    %vm153 = vcmask 392192
    %v154 = vsel %vm153, %v152, %v139
    %vm155 = vcmask 457728
    %v156 = vsel %vm155, %v154, %v142
    %v157 = vld [vmem:[%s5] sm:$0xff]
    %159 = vrot.lane.b32.xlu0 %v157, 8
    %v160 = vpop.permute.xlu0 %159
    %162 = vrot.lane.b32.xlu0 %v157, 16
    %v163 = vpop.permute.xlu0 %162
    %165 = vrot.lane.b32.xlu0 %v157, 24
    %v166 = vpop.permute.xlu0 %165
    %168 = vrot.lane.b32.xlu0 %v157, 32
    %v169 = vpop.permute.xlu0 %168
    %171 = vrot.lane.b32.xlu0 %v157, 40
    %v172 = vpop.permute.xlu0 %171
    %174 = vrot.lane.b32.xlu0 %v157, 48
    %v175 = vpop.permute.xlu0 %174
    %177 = vrot.lane.b32.xlu0 %v157, 56
    %v178 = vpop.permute.xlu0 %177
    %v180 = vsel %vm144, %v157, %v160
    %v181 = vsel %vm146, %v180, %v163
    %v182 = vsel %vm148, %v181, %v166
    %v183 = vsel %vm37, %v182, %v169
    %v184 = vsel %vm151, %v183, %v172
    %v185 = vsel %vm153, %v184, %v175
    %v186 = vsel %vm155, %v185, %v178
    %v187 = vmul.f32 %v111, %v156
    %v188 = vmul.f32 %v117, %v156
    %190 = vrot.lane.b32.xlu0 %v186, 64
    %v191 = vpop.permute.xlu0 %190
    %v193 = vmul.f32 %v111, %v191
    %v194 = vmul.f32 %v117, %v191
    %197 = vrot.lane.b32.xlu0 %v193, 64
    %v198 = vpop.permute.xlu0 %197
    %199 = vrot.lane.b32.xlu0 %v194, 64
    %v200 = vpop.permute.xlu0 %199
    %v203 = vadd.f32 %v187, %v198
    %v204 = vadd.f32 %v188, %v200
    %v205 = vld [vmem:[%s6] sm:$0xff]
    %v206 = vld [vmem:[%s6 + $0x8] sm:$0xff]
    %209 = vrot.lane.b32.xlu0 %v203, 96
    %v210 = vpop.permute.xlu0 %209
    %211 = vrot.lane.b32.xlu0 %v204, 96
    %v212 = vpop.permute.xlu0 %211
    %v213 = vsel %vm144, %v203, 0
    %v215 = vsel %vm144, %v204, 0
    %v217 = vsel %vm144, %v210, 0
    %v219 = vsel %vm144, %v212, 0
    %221 = vmatprep.subr.mxu0 0.0
    %222 = vmatpush1.xpose.msra.mxu0 %v217
    %223 = vmatprep.subr.mxu0 0.0
    %224 = vmatpush1.xpose.msra.mxu0 %v219
    %225 = vmatprep.subr.mxu0 0.0
    %226 = vmatpush1.xpose.msra.mxu0 0.0
    %227 = vmatprep.subr.mxu0 0.0
    %228 = vmatpush1.xpose.msra.mxu0 0.0
    %229 = vmatprep.subr.mxu0 0.0
    %230 = vmatpush1.xpose.msra.mxu0 0.0
    %231 = vmatprep.subr.mxu0 0.0
    %232 = vmatpush1.xpose.msra.mxu0 0.0
    %233 = vmatprep.subr.mxu0 0.0
    %234 = vmatpush1.xpose.msra.mxu0 0.0
    %235 = vmatprep.subr.mxu0 0.0
    %236 = vmatpush1.xpose.msra.mxu0 0.0
    %237 = vmatprep.subr.mxu0 0.0
    %238 = vmatpush1.xpose.msra.mxu0 0.0
    %239 = vmatprep.subr.mxu0 0.0
    %240 = vmatpush1.xpose.msra.mxu0 0.0
    %241 = vmatprep.subr.mxu0 0.0
    %242 = vmatpush1.xpose.msra.mxu0 0.0
    %243 = vmatprep.subr.mxu0 0.0
    %244 = vmatpush1.xpose.msra.mxu0 0.0
    %245 = vmatprep.subr.mxu0 0.0
    %246 = vmatpush1.xpose.msra.mxu0 0.0
    %247 = vmatprep.subr.mxu0 0.0
    %248 = vmatpush1.xpose.msra.mxu0 0.0
    %249 = vmatprep.subr.mxu0 0.0
    %250 = vmatpush1.xpose.msra.mxu0 0.0
    %251 = vmatprep.subr.mxu0 0.0
    %252 = vmatpush1.xpose.msra.mxu0 0.0
    %253 = vmatprep.subr.mxu0 0.0
    %254 = vmatpush1.xpose.msra.mxu0 0.0
    %255 = vmatprep.subr.mxu0 0.0
    %256 = vmatpush1.xpose.msra.mxu0 0.0
    %257 = vmatprep.subr.mxu0 0.0
    %258 = vmatpush1.xpose.msra.mxu0 0.0
    %259 = vmatprep.subr.mxu0 0.0
    %260 = vmatpush1.xpose.msra.mxu0 0.0
    %261 = vmatprep.subr.mxu0 0.0
    %262 = vmatpush1.xpose.msra.mxu0 0.0
    %263 = vmatprep.subr.mxu0 0.0
    %264 = vmatpush1.xpose.msra.mxu0 0.0
    %265 = vmatprep.subr.mxu0 0.0
    %266 = vmatpush1.xpose.msra.mxu0 0.0
    %267 = vmatprep.subr.mxu0 0.0
    %268 = vmatpush1.xpose.msra.mxu0 0.0
    %269 = vmatprep.subr.mxu0 0.0
    %270 = vmatpush1.xpose.msra.mxu0 0.0
    %271 = vmatprep.subr.mxu0 0.0
    %272 = vmatpush1.xpose.msra.mxu0 0.0
    %273 = vmatprep.subr.mxu0 0.0
    %274 = vmatpush1.xpose.msra.mxu0 0.0
    %275 = vmatprep.subr.mxu0 0.0
    %276 = vmatpush1.xpose.msra.mxu0 0.0
    %277 = vmatprep.subr.mxu0 0.0
    %278 = vmatpush1.xpose.msra.mxu0 0.0
    %279 = vmatprep.subr.mxu0 0.0
    %280 = vmatpush1.xpose.msra.mxu0 0.0
    %281 = vmatprep.subr.mxu0 0.0
    %282 = vmatpush1.xpose.msra.mxu0 0.0
    %283 = vmatprep.subr.mxu0 0.0
    %284 = vmatpush1.xpose.msra.mxu0 0.0
    %285 = vmatprep.mubr.f32.mxu0 0.0
    %286 = vmatmul.mubr.f32.gmra.mrb[0].mxu0 %v213
    %v287 = vpop.f32.mrb[0].mxu0
    %v288 = vadd.f32 %v205, %v287
    %v289 = vpop.f32.mrb[0].mxu0
    %290 = vmatprep.mubr.f32.mxu0 0.0
    %291 = vmatmul.mubr.f32.gmra.mrb[0].mxu0 %v215
    %v292 = vpop.f32.mrb[0].mxu0
    %v293 = vadd.f32 %v206, %v292
    %v294 = vpop.f32.mrb[0].mxu0
    %295 = vdwg.mxu0
    %v296 = vsel %vm146, %v288, -inf
    %297 = vmax.xlane.f32.xlu0 %v296
    %v298 = vpop.xlane.xlu0 %297
    %v299 = vsel %vm146, %v293, -inf
    %300 = vmax.xlane.f32.xlu0 %v299
    %v301 = vpop.xlane.xlu0 %300
    %v302 = vsub.f32 %v288, %v298
    %v303 = vsub.f32 %v293, %v301
    %v304 = vmul.f32 %v302, 1.442695
    %v305 = vpow.pop %v304
    %v306 = vmul.f32 %v303, 1.442695
    %v307 = vpow.pop %v306
    %v308 = vsel %vm146, %v305, 0.0
    %309 = vadd.xlane.f32.xlu0 %v308
    %v310 = vpop.xlane.xlu0 %309
    %v311 = vsel %vm146, %v307, 0.0
    %312 = vadd.xlane.f32.xlu0 %v311
    %v313 = vpop.xlane.xlu0 %312
    %v314 = vrcp.pop %v310
    %v315 = vmul.f32 %v305, %v314
    %v316 = vrcp.pop %v313
    %v317 = vmul.f32 %v307, %v316
    %v319 = vsel %vm146, %v315, 0
    %v322 = vsel %vm146, %v317, 0
    %324 = vmatprep.subr.mxu0 0.0
    %325 = vmatpush1.msra.mxu0 %v113
    %326 = vmatprep.subr.mxu0 0.0
    %327 = vmatpush1.msra.mxu0 %v119
    %328 = vmatprep.subr.mxu0 0.0
    %329 = vmatpush1.msra.mxu0 0.0
    %330 = vmatprep.subr.mxu0 0.0
    %331 = vmatpush1.msra.mxu0 0.0
    %332 = vmatprep.subr.mxu0 0.0
    %333 = vmatpush1.msra.mxu0 0.0
    %334 = vmatprep.subr.mxu0 0.0
    %335 = vmatpush1.msra.mxu0 0.0
    %336 = vmatprep.subr.mxu0 0.0
    %337 = vmatpush1.msra.mxu0 0.0
    %338 = vmatprep.subr.mxu0 0.0
    %339 = vmatpush1.msra.mxu0 0.0
    %340 = vmatprep.subr.mxu0 0.0
    %341 = vmatpush1.msra.mxu0 0.0
    %342 = vmatprep.subr.mxu0 0.0
    %343 = vmatpush1.msra.mxu0 0.0
    %344 = vmatprep.subr.mxu0 0.0
    %345 = vmatpush1.msra.mxu0 0.0
    %346 = vmatprep.subr.mxu0 0.0
    %347 = vmatpush1.msra.mxu0 0.0
    %348 = vmatprep.subr.mxu0 0.0
    %349 = vmatpush1.msra.mxu0 0.0
    %350 = vmatprep.subr.mxu0 0.0
    %351 = vmatpush1.msra.mxu0 0.0
    %352 = vmatprep.subr.mxu0 0.0
    %353 = vmatpush1.msra.mxu0 0.0
    %354 = vmatprep.subr.mxu0 0.0
    %355 = vmatpush1.msra.mxu0 0.0
    %356 = vmatprep.subr.mxu0 0.0
    %357 = vmatpush1.msra.mxu0 0.0
    %358 = vmatprep.subr.mxu0 0.0
    %359 = vmatpush1.msra.mxu0 0.0
    %360 = vmatprep.subr.mxu0 0.0
    %361 = vmatpush1.msra.mxu0 0.0
    %362 = vmatprep.subr.mxu0 0.0
    %363 = vmatpush1.msra.mxu0 0.0
    %364 = vmatprep.subr.mxu0 0.0
    %365 = vmatpush1.msra.mxu0 0.0
    %366 = vmatprep.subr.mxu0 0.0
    %367 = vmatpush1.msra.mxu0 0.0
    %368 = vmatprep.subr.mxu0 0.0
    %369 = vmatpush1.msra.mxu0 0.0
    %370 = vmatprep.subr.mxu0 0.0
    %371 = vmatpush1.msra.mxu0 0.0
    %372 = vmatprep.subr.mxu0 0.0
    %373 = vmatpush1.msra.mxu0 0.0
    %374 = vmatprep.subr.mxu0 0.0
    %375 = vmatpush1.msra.mxu0 0.0
    %376 = vmatprep.subr.mxu0 0.0
    %377 = vmatpush1.msra.mxu0 0.0
    %378 = vmatprep.subr.mxu0 0.0
    %379 = vmatpush1.msra.mxu0 0.0
    %380 = vmatprep.subr.mxu0 0.0
    %381 = vmatpush1.msra.mxu0 0.0
    %382 = vmatprep.subr.mxu0 0.0
    %383 = vmatpush1.msra.mxu0 0.0
    %384 = vmatprep.subr.mxu0 0.0
    %385 = vmatpush1.msra.mxu0 0.0
    %386 = vmatprep.subr.mxu0 0.0
    %387 = vmatpush1.msra.mxu0 0.0
    %388 = vmatprep.mubr.f32.mxu0 0.0
    %389 = vmatmul.mubr.f32.gmra.mrb[0].mxu0 %v319
    %v390 = vpop.f32.mrb[0].mxu0
    %v391 = vadd.f32 0.0, %v390
    %v392 = vpop.f32.mrb[0].mxu0
    %393 = vmatprep.mubr.f32.mxu0 0.0
    %394 = vmatmul.mubr.f32.gmra.mrb[0].mxu0 %v322
    %v395 = vpop.f32.mrb[0].mxu0
    %v396 = vadd.f32 0.0, %v395
    %v397 = vpop.f32.mrb[0].mxu0
    %398 = vdwg.mxu0
    %399 = vst.msk [vmem:[#allocation2] sm:$0xff] %vm37, %v391
    %400 = vst.msk [vmem:[#allocation2 + $0x8] sm:$0xff] %vm37, %v396
    %401 = vrot.lane.b32.xlu0 %v203, 120
    %v402 = vpop.permute.xlu0 %401
    %403 = vrot.lane.b32.xlu0 %v204, 120
    %v404 = vpop.permute.xlu0 %403
    %405 = vrot.lane.b32.xlu0 %v203, 88
    %v406 = vpop.permute.xlu0 %405
    %407 = vrot.lane.b32.xlu0 %v204, 88
    %v408 = vpop.permute.xlu0 %407
    %v409 = vsel %vm144, %v402, 0
    %v411 = vsel %vm144, %v404, 0
    %v413 = vsel %vm144, %v406, 0
    %v415 = vsel %vm144, %v408, 0
    %417 = vmatprep.subr.mxu0 0.0
    %418 = vmatpush1.xpose.msra.mxu0 %v413
    %419 = vmatprep.subr.mxu0 0.0
    %420 = vmatpush1.xpose.msra.mxu0 %v415
    %421 = vmatprep.subr.mxu0 0.0
    %422 = vmatpush1.xpose.msra.mxu0 0.0
    %423 = vmatprep.subr.mxu0 0.0
    %424 = vmatpush1.xpose.msra.mxu0 0.0
    %425 = vmatprep.subr.mxu0 0.0
    %426 = vmatpush1.xpose.msra.mxu0 0.0
    %427 = vmatprep.subr.mxu0 0.0
    %428 = vmatpush1.xpose.msra.mxu0 0.0
    %429 = vmatprep.subr.mxu0 0.0
    %430 = vmatpush1.xpose.msra.mxu0 0.0
    %431 = vmatprep.subr.mxu0 0.0
    %432 = vmatpush1.xpose.msra.mxu0 0.0
    %433 = vmatprep.subr.mxu0 0.0
    %434 = vmatpush1.xpose.msra.mxu0 0.0
    %435 = vmatprep.subr.mxu0 0.0
    %436 = vmatpush1.xpose.msra.mxu0 0.0
    %437 = vmatprep.subr.mxu0 0.0
    %438 = vmatpush1.xpose.msra.mxu0 0.0
    %439 = vmatprep.subr.mxu0 0.0
    %440 = vmatpush1.xpose.msra.mxu0 0.0
    %441 = vmatprep.subr.mxu0 0.0
    %442 = vmatpush1.xpose.msra.mxu0 0.0
    %443 = vmatprep.subr.mxu0 0.0
    %444 = vmatpush1.xpose.msra.mxu0 0.0
    %445 = vmatprep.subr.mxu0 0.0
    %446 = vmatpush1.xpose.msra.mxu0 0.0
    %447 = vmatprep.subr.mxu0 0.0
    %448 = vmatpush1.xpose.msra.mxu0 0.0
    %449 = vmatprep.subr.mxu0 0.0
    %450 = vmatpush1.xpose.msra.mxu0 0.0
    %451 = vmatprep.subr.mxu0 0.0
    %452 = vmatpush1.xpose.msra.mxu0 0.0
    %453 = vmatprep.subr.mxu0 0.0
    %454 = vmatpush1.xpose.msra.mxu0 0.0
    %455 = vmatprep.subr.mxu0 0.0
    %456 = vmatpush1.xpose.msra.mxu0 0.0
    %457 = vmatprep.subr.mxu0 0.0
    %458 = vmatpush1.xpose.msra.mxu0 0.0
    %459 = vmatprep.subr.mxu0 0.0
    %460 = vmatpush1.xpose.msra.mxu0 0.0
    %461 = vmatprep.subr.mxu0 0.0
    %462 = vmatpush1.xpose.msra.mxu0 0.0
    %463 = vmatprep.subr.mxu0 0.0
    %464 = vmatpush1.xpose.msra.mxu0 0.0
    %465 = vmatprep.subr.mxu0 0.0
    %466 = vmatpush1.xpose.msra.mxu0 0.0
    %467 = vmatprep.subr.mxu0 0.0
    %468 = vmatpush1.xpose.msra.mxu0 0.0
    %469 = vmatprep.subr.mxu0 0.0
    %470 = vmatpush1.xpose.msra.mxu0 0.0
    %471 = vmatprep.subr.mxu0 0.0
    %472 = vmatpush1.xpose.msra.mxu0 0.0
    %473 = vmatprep.subr.mxu0 0.0
    %474 = vmatpush1.xpose.msra.mxu0 0.0
    %475 = vmatprep.subr.mxu0 0.0
    %476 = vmatpush1.xpose.msra.mxu0 0.0
    %477 = vmatprep.subr.mxu0 0.0
    %478 = vmatpush1.xpose.msra.mxu0 0.0
    %479 = vmatprep.subr.mxu0 0.0
    %480 = vmatpush1.xpose.msra.mxu0 0.0
    %481 = vmatprep.mubr.f32.mxu0 0.0
    %482 = vmatmul.mubr.f32.gmra.mrb[0].mxu0 %v409
    %v483 = vpop.f32.mrb[0].mxu0
    %v484 = vadd.f32 %v205, %v483
    %v485 = vpop.f32.mrb[0].mxu0
    %486 = vmatprep.mubr.f32.mxu0 0.0
    %487 = vmatmul.mubr.f32.gmra.mrb[0].mxu0 %v411
    %v488 = vpop.f32.mrb[0].mxu0
    %v489 = vadd.f32 %v206, %v488
    %v490 = vpop.f32.mrb[0].mxu0
    %491 = vdwg.mxu0
    %v492 = vsel %vm146, %v484, -inf
    %493 = vmax.xlane.f32.xlu0 %v492
    %v494 = vpop.xlane.xlu0 %493
    %v495 = vsel %vm146, %v489, -inf
    %496 = vmax.xlane.f32.xlu0 %v495
    %v497 = vpop.xlane.xlu0 %496
    %v498 = vsub.f32 %v484, %v494
    %v499 = vsub.f32 %v489, %v497
    %v500 = vmul.f32 %v498, 1.442695
    %v501 = vpow.pop %v500
    %v502 = vmul.f32 %v499, 1.442695
    %v503 = vpow.pop %v502
    %v504 = vsel %vm146, %v501, 0.0
    %505 = vadd.xlane.f32.xlu0 %v504
    %v506 = vpop.xlane.xlu0 %505
    %v507 = vsel %vm146, %v503, 0.0
    %508 = vadd.xlane.f32.xlu0 %v507
    %v509 = vpop.xlane.xlu0 %508
    %v510 = vrcp.pop %v506
    %v511 = vmul.f32 %v501, %v510
    %v512 = vrcp.pop %v509
    %v513 = vmul.f32 %v503, %v512
    %516 = vrot.lane.b32.xlu0 %v113, 96
    %v517 = vpop.permute.xlu0 %516
    %518 = vrot.lane.b32.xlu0 %v119, 96
    %v519 = vpop.permute.xlu0 %518
    %v523 = vsel %vm146, %v511, 0
    %v526 = vsel %vm146, %v513, 0
    %528 = vmatprep.subr.mxu0 0.0
    %529 = vmatpush1.msra.mxu0 %v517
    %530 = vmatprep.subr.mxu0 0.0
    %531 = vmatpush1.msra.mxu0 %v519
    %532 = vmatprep.subr.mxu0 0.0
    %533 = vmatpush1.msra.mxu0 0.0
    %534 = vmatprep.subr.mxu0 0.0
    %535 = vmatpush1.msra.mxu0 0.0
    %536 = vmatprep.subr.mxu0 0.0
    %537 = vmatpush1.msra.mxu0 0.0
    %538 = vmatprep.subr.mxu0 0.0
    %539 = vmatpush1.msra.mxu0 0.0
    %540 = vmatprep.subr.mxu0 0.0
    %541 = vmatpush1.msra.mxu0 0.0
    %542 = vmatprep.subr.mxu0 0.0
    %543 = vmatpush1.msra.mxu0 0.0
    %544 = vmatprep.subr.mxu0 0.0
    %545 = vmatpush1.msra.mxu0 0.0
    %546 = vmatprep.subr.mxu0 0.0
    %547 = vmatpush1.msra.mxu0 0.0
    %548 = vmatprep.subr.mxu0 0.0
    %549 = vmatpush1.msra.mxu0 0.0
    %550 = vmatprep.subr.mxu0 0.0
    %551 = vmatpush1.msra.mxu0 0.0
    %552 = vmatprep.subr.mxu0 0.0
    %553 = vmatpush1.msra.mxu0 0.0
    %554 = vmatprep.subr.mxu0 0.0
    %555 = vmatpush1.msra.mxu0 0.0
    %556 = vmatprep.subr.mxu0 0.0
    %557 = vmatpush1.msra.mxu0 0.0
    %558 = vmatprep.subr.mxu0 0.0
    %559 = vmatpush1.msra.mxu0 0.0
    %560 = vmatprep.subr.mxu0 0.0
    %561 = vmatpush1.msra.mxu0 0.0
    %562 = vmatprep.subr.mxu0 0.0
    %563 = vmatpush1.msra.mxu0 0.0
    %564 = vmatprep.subr.mxu0 0.0
    %565 = vmatpush1.msra.mxu0 0.0
    %566 = vmatprep.subr.mxu0 0.0
    %567 = vmatpush1.msra.mxu0 0.0
    %568 = vmatprep.subr.mxu0 0.0
    %569 = vmatpush1.msra.mxu0 0.0
    %570 = vmatprep.subr.mxu0 0.0
    %571 = vmatpush1.msra.mxu0 0.0
    %572 = vmatprep.subr.mxu0 0.0
    %573 = vmatpush1.msra.mxu0 0.0
    %574 = vmatprep.subr.mxu0 0.0
    %575 = vmatpush1.msra.mxu0 0.0
    %576 = vmatprep.subr.mxu0 0.0
    %577 = vmatpush1.msra.mxu0 0.0
    %578 = vmatprep.subr.mxu0 0.0
    %579 = vmatpush1.msra.mxu0 0.0
    %580 = vmatprep.subr.mxu0 0.0
    %581 = vmatpush1.msra.mxu0 0.0
    %582 = vmatprep.subr.mxu0 0.0
    %583 = vmatpush1.msra.mxu0 0.0
    %584 = vmatprep.subr.mxu0 0.0
    %585 = vmatpush1.msra.mxu0 0.0
    %586 = vmatprep.subr.mxu0 0.0
    %587 = vmatpush1.msra.mxu0 0.0
    %588 = vmatprep.subr.mxu0 0.0
    %589 = vmatpush1.msra.mxu0 0.0
    %590 = vmatprep.subr.mxu0 0.0
    %591 = vmatpush1.msra.mxu0 0.0
    %592 = vmatprep.mubr.f32.mxu0 0.0
    %593 = vmatmul.mubr.f32.gmra.mrb[0].mxu0 %v523
    %v594 = vpop.f32.mrb[0].mxu0
    %v595 = vadd.f32 0.0, %v594
    %v596 = vpop.f32.mrb[0].mxu0
    %597 = vmatprep.mubr.f32.mxu0 0.0
    %598 = vmatmul.mubr.f32.gmra.mrb[0].mxu0 %v526
    %v599 = vpop.f32.mrb[0].mxu0
    %v600 = vadd.f32 0.0, %v599
    %v601 = vpop.f32.mrb[0].mxu0
    %602 = vdwg.mxu0
    %605 = vrot.lane.b32.xlu0 %v595, 32
    %v606 = vpop.permute.xlu0 %605
    %607 = vrot.lane.b32.xlu0 %v600, 32
    %v608 = vpop.permute.xlu0 %607
    %vm611 = vcmask 523520
    %612 = vst.msk [vmem:[#allocation2] sm:$0xff] %vm611, %v606
    %613 = vst.msk [vmem:[#allocation2 + $0x8] sm:$0xff] %vm611, %v608
    %614 = vrot.lane.b32.xlu0 %v203, 112
    %v615 = vpop.permute.xlu0 %614
    %616 = vrot.lane.b32.xlu0 %v204, 112
    %v617 = vpop.permute.xlu0 %616
    %618 = vrot.lane.b32.xlu0 %v203, 80
    %v619 = vpop.permute.xlu0 %618
    %620 = vrot.lane.b32.xlu0 %v204, 80
    %v621 = vpop.permute.xlu0 %620
    %v622 = vsel %vm144, %v615, 0
    %v624 = vsel %vm144, %v617, 0
    %v626 = vsel %vm144, %v619, 0
    %v628 = vsel %vm144, %v621, 0
    %630 = vmatprep.subr.mxu0 0.0
    %631 = vmatpush1.xpose.msra.mxu0 %v626
    %632 = vmatprep.subr.mxu0 0.0
    %633 = vmatpush1.xpose.msra.mxu0 %v628
    %634 = vmatprep.subr.mxu0 0.0
    %635 = vmatpush1.xpose.msra.mxu0 0.0
    %636 = vmatprep.subr.mxu0 0.0
    %637 = vmatpush1.xpose.msra.mxu0 0.0
    %638 = vmatprep.subr.mxu0 0.0
    %639 = vmatpush1.xpose.msra.mxu0 0.0
    %640 = vmatprep.subr.mxu0 0.0
    %641 = vmatpush1.xpose.msra.mxu0 0.0
    %642 = vmatprep.subr.mxu0 0.0
    %643 = vmatpush1.xpose.msra.mxu0 0.0
    %644 = vmatprep.subr.mxu0 0.0
    %645 = vmatpush1.xpose.msra.mxu0 0.0
    %646 = vmatprep.subr.mxu0 0.0
    %647 = vmatpush1.xpose.msra.mxu0 0.0
    %648 = vmatprep.subr.mxu0 0.0
    %649 = vmatpush1.xpose.msra.mxu0 0.0
    %650 = vmatprep.subr.mxu0 0.0
    %651 = vmatpush1.xpose.msra.mxu0 0.0
    %652 = vmatprep.subr.mxu0 0.0
    %653 = vmatpush1.xpose.msra.mxu0 0.0
    %654 = vmatprep.subr.mxu0 0.0
    %655 = vmatpush1.xpose.msra.mxu0 0.0
    %656 = vmatprep.subr.mxu0 0.0
    %657 = vmatpush1.xpose.msra.mxu0 0.0
    %658 = vmatprep.subr.mxu0 0.0
    %659 = vmatpush1.xpose.msra.mxu0 0.0
    %660 = vmatprep.subr.mxu0 0.0
    %661 = vmatpush1.xpose.msra.mxu0 0.0
    %662 = vmatprep.subr.mxu0 0.0
    %663 = vmatpush1.xpose.msra.mxu0 0.0
    %664 = vmatprep.subr.mxu0 0.0
    %665 = vmatpush1.xpose.msra.mxu0 0.0
    %666 = vmatprep.subr.mxu0 0.0
    %667 = vmatpush1.xpose.msra.mxu0 0.0
    %668 = vmatprep.subr.mxu0 0.0
    %669 = vmatpush1.xpose.msra.mxu0 0.0
    %670 = vmatprep.subr.mxu0 0.0
    %671 = vmatpush1.xpose.msra.mxu0 0.0
    %672 = vmatprep.subr.mxu0 0.0
    %673 = vmatpush1.xpose.msra.mxu0 0.0
    %674 = vmatprep.subr.mxu0 0.0
    %675 = vmatpush1.xpose.msra.mxu0 0.0
    %676 = vmatprep.subr.mxu0 0.0
    %677 = vmatpush1.xpose.msra.mxu0 0.0
    %678 = vmatprep.subr.mxu0 0.0
    %679 = vmatpush1.xpose.msra.mxu0 0.0
    %680 = vmatprep.subr.mxu0 0.0
    %681 = vmatpush1.xpose.msra.mxu0 0.0
    %682 = vmatprep.subr.mxu0 0.0
    %683 = vmatpush1.xpose.msra.mxu0 0.0
    %684 = vmatprep.subr.mxu0 0.0
    %685 = vmatpush1.xpose.msra.mxu0 0.0
    %686 = vmatprep.subr.mxu0 0.0
    %687 = vmatpush1.xpose.msra.mxu0 0.0
    %688 = vmatprep.subr.mxu0 0.0
    %689 = vmatpush1.xpose.msra.mxu0 0.0
    %690 = vmatprep.subr.mxu0 0.0
    %691 = vmatpush1.xpose.msra.mxu0 0.0
    %692 = vmatprep.subr.mxu0 0.0
    %693 = vmatpush1.xpose.msra.mxu0 0.0
    %694 = vmatprep.mubr.f32.mxu0 0.0
    %695 = vmatmul.mubr.f32.gmra.mrb[0].mxu0 %v622
    %v696 = vpop.f32.mrb[0].mxu0
    %v697 = vadd.f32 %v205, %v696
    %v698 = vpop.f32.mrb[0].mxu0
    %699 = vmatprep.mubr.f32.mxu0 0.0
    %700 = vmatmul.mubr.f32.gmra.mrb[0].mxu0 %v624
    %v701 = vpop.f32.mrb[0].mxu0
    %v702 = vadd.f32 %v206, %v701
    %v703 = vpop.f32.mrb[0].mxu0
    %704 = vdwg.mxu0
    %v705 = vsel %vm146, %v697, -inf
    %706 = vmax.xlane.f32.xlu0 %v705
    %v707 = vpop.xlane.xlu0 %706
    %v708 = vsel %vm146, %v702, -inf
    %709 = vmax.xlane.f32.xlu0 %v708
    %v710 = vpop.xlane.xlu0 %709
    %v711 = vsub.f32 %v697, %v707
    %v712 = vsub.f32 %v702, %v710
    %v713 = vmul.f32 %v711, 1.442695
    %v714 = vpow.pop %v713
    %v715 = vmul.f32 %v712, 1.442695
    %v716 = vpow.pop %v715
    %v717 = vsel %vm146, %v714, 0.0
    %718 = vadd.xlane.f32.xlu0 %v717
    %v719 = vpop.xlane.xlu0 %718
    %v720 = vsel %vm146, %v716, 0.0
    %721 = vadd.xlane.f32.xlu0 %v720
    %v722 = vpop.xlane.xlu0 %721
    %v723 = vrcp.pop %v719
    %v724 = vmul.f32 %v714, %v723
    %v725 = vrcp.pop %v722
    %v726 = vmul.f32 %v716, %v725
    %727 = vrot.lane.b32.xlu0 %v113, 64
    %v728 = vpop.permute.xlu0 %727
    %729 = vrot.lane.b32.xlu0 %v119, 64
    %v730 = vpop.permute.xlu0 %729
    %v734 = vsel %vm146, %v724, 0
    %v737 = vsel %vm146, %v726, 0
    %739 = vmatprep.subr.mxu0 0.0
    %740 = vmatpush1.msra.mxu0 %v728
    %741 = vmatprep.subr.mxu0 0.0
    %742 = vmatpush1.msra.mxu0 %v730
    %743 = vmatprep.subr.mxu0 0.0
    %744 = vmatpush1.msra.mxu0 0.0
    %745 = vmatprep.subr.mxu0 0.0
    %746 = vmatpush1.msra.mxu0 0.0
    %747 = vmatprep.subr.mxu0 0.0
    %748 = vmatpush1.msra.mxu0 0.0
    %749 = vmatprep.subr.mxu0 0.0
    %750 = vmatpush1.msra.mxu0 0.0
    %751 = vmatprep.subr.mxu0 0.0
    %752 = vmatpush1.msra.mxu0 0.0
    %753 = vmatprep.subr.mxu0 0.0
    %754 = vmatpush1.msra.mxu0 0.0
    %755 = vmatprep.subr.mxu0 0.0
    %756 = vmatpush1.msra.mxu0 0.0
    %757 = vmatprep.subr.mxu0 0.0
    %758 = vmatpush1.msra.mxu0 0.0
    %759 = vmatprep.subr.mxu0 0.0
    %760 = vmatpush1.msra.mxu0 0.0
    %761 = vmatprep.subr.mxu0 0.0
    %762 = vmatpush1.msra.mxu0 0.0
    %763 = vmatprep.subr.mxu0 0.0
    %764 = vmatpush1.msra.mxu0 0.0
    %765 = vmatprep.subr.mxu0 0.0
    %766 = vmatpush1.msra.mxu0 0.0
    %767 = vmatprep.subr.mxu0 0.0
    %768 = vmatpush1.msra.mxu0 0.0
    %769 = vmatprep.subr.mxu0 0.0
    %770 = vmatpush1.msra.mxu0 0.0
    %771 = vmatprep.subr.mxu0 0.0
    %772 = vmatpush1.msra.mxu0 0.0
    %773 = vmatprep.subr.mxu0 0.0
    %774 = vmatpush1.msra.mxu0 0.0
    %775 = vmatprep.subr.mxu0 0.0
    %776 = vmatpush1.msra.mxu0 0.0
    %777 = vmatprep.subr.mxu0 0.0
    %778 = vmatpush1.msra.mxu0 0.0
    %779 = vmatprep.subr.mxu0 0.0
    %780 = vmatpush1.msra.mxu0 0.0
    %781 = vmatprep.subr.mxu0 0.0
    %782 = vmatpush1.msra.mxu0 0.0
    %783 = vmatprep.subr.mxu0 0.0
    %784 = vmatpush1.msra.mxu0 0.0
    %785 = vmatprep.subr.mxu0 0.0
    %786 = vmatpush1.msra.mxu0 0.0
    %787 = vmatprep.subr.mxu0 0.0
    %788 = vmatpush1.msra.mxu0 0.0
    %789 = vmatprep.subr.mxu0 0.0
    %790 = vmatpush1.msra.mxu0 0.0
    %791 = vmatprep.subr.mxu0 0.0
    %792 = vmatpush1.msra.mxu0 0.0
    %793 = vmatprep.subr.mxu0 0.0
    %794 = vmatpush1.msra.mxu0 0.0
    %795 = vmatprep.subr.mxu0 0.0
    %796 = vmatpush1.msra.mxu0 0.0
    %797 = vmatprep.subr.mxu0 0.0
    %798 = vmatpush1.msra.mxu0 0.0
    %799 = vmatprep.subr.mxu0 0.0
    %800 = vmatpush1.msra.mxu0 0.0
    %801 = vmatprep.subr.mxu0 0.0
    %802 = vmatpush1.msra.mxu0 0.0
    %803 = vmatprep.mubr.f32.mxu0 0.0
    %804 = vmatmul.mubr.f32.gmra.mrb[0].mxu0 %v734
    %v805 = vpop.f32.mrb[0].mxu0
    %v806 = vadd.f32 0.0, %v805
    %v807 = vpop.f32.mrb[0].mxu0
    %808 = vmatprep.mubr.f32.mxu0 0.0
    %809 = vmatmul.mubr.f32.gmra.mrb[0].mxu0 %v737
    %v810 = vpop.f32.mrb[0].mxu0
    %v811 = vadd.f32 0.0, %v810
    %v812 = vpop.f32.mrb[0].mxu0
    %813 = vdwg.mxu0
    %816 = vrot.lane.b32.xlu0 %v806, 64
    %v817 = vpop.permute.xlu0 %816
    %818 = vrot.lane.b32.xlu0 %v811, 64
    %v819 = vpop.permute.xlu0 %818
    %vm822 = vcmask 785920
    %823 = vst.msk [vmem:[#allocation2] sm:$0xff] %vm822, %v817
    %824 = vst.msk [vmem:[#allocation2 + $0x8] sm:$0xff] %vm822, %v819
    %825 = vrot.lane.b32.xlu0 %v203, 104
    %v826 = vpop.permute.xlu0 %825
    %827 = vrot.lane.b32.xlu0 %v204, 104
    %v828 = vpop.permute.xlu0 %827
    %829 = vrot.lane.b32.xlu0 %v203, 72
    %v830 = vpop.permute.xlu0 %829
    %831 = vrot.lane.b32.xlu0 %v204, 72
    %v832 = vpop.permute.xlu0 %831
    %v833 = vsel %vm144, %v826, 0
    %v835 = vsel %vm144, %v828, 0
    %v837 = vsel %vm144, %v830, 0
    %v839 = vsel %vm144, %v832, 0
    %841 = vmatprep.subr.mxu0 0.0
    %842 = vmatpush1.xpose.msra.mxu0 %v837
    %843 = vmatprep.subr.mxu0 0.0
    %844 = vmatpush1.xpose.msra.mxu0 %v839
    %845 = vmatprep.subr.mxu0 0.0
    %846 = vmatpush1.xpose.msra.mxu0 0.0
    %847 = vmatprep.subr.mxu0 0.0
    %848 = vmatpush1.xpose.msra.mxu0 0.0
    %849 = vmatprep.subr.mxu0 0.0
    %850 = vmatpush1.xpose.msra.mxu0 0.0
    %851 = vmatprep.subr.mxu0 0.0
    %852 = vmatpush1.xpose.msra.mxu0 0.0
    %853 = vmatprep.subr.mxu0 0.0
    %854 = vmatpush1.xpose.msra.mxu0 0.0
    %855 = vmatprep.subr.mxu0 0.0
    %856 = vmatpush1.xpose.msra.mxu0 0.0
    %857 = vmatprep.subr.mxu0 0.0
    %858 = vmatpush1.xpose.msra.mxu0 0.0
    %859 = vmatprep.subr.mxu0 0.0
    %860 = vmatpush1.xpose.msra.mxu0 0.0
    %861 = vmatprep.subr.mxu0 0.0
    %862 = vmatpush1.xpose.msra.mxu0 0.0
    %863 = vmatprep.subr.mxu0 0.0
    %864 = vmatpush1.xpose.msra.mxu0 0.0
    %865 = vmatprep.subr.mxu0 0.0
    %866 = vmatpush1.xpose.msra.mxu0 0.0
    %867 = vmatprep.subr.mxu0 0.0
    %868 = vmatpush1.xpose.msra.mxu0 0.0
    %869 = vmatprep.subr.mxu0 0.0
    %870 = vmatpush1.xpose.msra.mxu0 0.0
    %871 = vmatprep.subr.mxu0 0.0
    %872 = vmatpush1.xpose.msra.mxu0 0.0
    %873 = vmatprep.subr.mxu0 0.0
    %874 = vmatpush1.xpose.msra.mxu0 0.0
    %875 = vmatprep.subr.mxu0 0.0
    %876 = vmatpush1.xpose.msra.mxu0 0.0
    %877 = vmatprep.subr.mxu0 0.0
    %878 = vmatpush1.xpose.msra.mxu0 0.0
    %879 = vmatprep.subr.mxu0 0.0
    %880 = vmatpush1.xpose.msra.mxu0 0.0
    %881 = vmatprep.subr.mxu0 0.0
    %882 = vmatpush1.xpose.msra.mxu0 0.0
    %883 = vmatprep.subr.mxu0 0.0
    %884 = vmatpush1.xpose.msra.mxu0 0.0
    %885 = vmatprep.subr.mxu0 0.0
    %886 = vmatpush1.xpose.msra.mxu0 0.0
    %887 = vmatprep.subr.mxu0 0.0
    %888 = vmatpush1.xpose.msra.mxu0 0.0
    %889 = vmatprep.subr.mxu0 0.0
    %890 = vmatpush1.xpose.msra.mxu0 0.0
    %891 = vmatprep.subr.mxu0 0.0
    %892 = vmatpush1.xpose.msra.mxu0 0.0
    %893 = vmatprep.subr.mxu0 0.0
    %894 = vmatpush1.xpose.msra.mxu0 0.0
    %895 = vmatprep.subr.mxu0 0.0
    %896 = vmatpush1.xpose.msra.mxu0 0.0
    %897 = vmatprep.subr.mxu0 0.0
    %898 = vmatpush1.xpose.msra.mxu0 0.0
    %899 = vmatprep.subr.mxu0 0.0
    %900 = vmatpush1.xpose.msra.mxu0 0.0
    %901 = vmatprep.subr.mxu0 0.0
    %902 = vmatpush1.xpose.msra.mxu0 0.0
    %903 = vmatprep.subr.mxu0 0.0
    %904 = vmatpush1.xpose.msra.mxu0 0.0
    %905 = vmatprep.mubr.f32.mxu0 0.0
    %906 = vmatmul.mubr.f32.gmra.mrb[0].mxu0 %v833
    %v907 = vpop.f32.mrb[0].mxu0
    %v908 = vadd.f32 %v205, %v907
    %v909 = vpop.f32.mrb[0].mxu0
    %910 = vmatprep.mubr.f32.mxu0 0.0
    %911 = vmatmul.mubr.f32.gmra.mrb[0].mxu0 %v835
    %v912 = vpop.f32.mrb[0].mxu0
    %v913 = vadd.f32 %v206, %v912
    %v914 = vpop.f32.mrb[0].mxu0
    %915 = vdwg.mxu0
    %v916 = vsel %vm146, %v908, -inf
    %917 = vmax.xlane.f32.xlu0 %v916
    %v918 = vpop.xlane.xlu0 %917
    %v919 = vsel %vm146, %v913, -inf
    %920 = vmax.xlane.f32.xlu0 %v919
    %v921 = vpop.xlane.xlu0 %920
    %v922 = vsub.f32 %v908, %v918
    %v923 = vsub.f32 %v913, %v921
    %v924 = vmul.f32 %v922, 1.442695
    %v925 = vpow.pop %v924
    %v926 = vmul.f32 %v923, 1.442695
    %v927 = vpow.pop %v926
    %v928 = vsel %vm146, %v925, 0.0
    %929 = vadd.xlane.f32.xlu0 %v928
    %v930 = vpop.xlane.xlu0 %929
    %v931 = vsel %vm146, %v927, 0.0
    %932 = vadd.xlane.f32.xlu0 %v931
    %v933 = vpop.xlane.xlu0 %932
    %v934 = vrcp.pop %v930
    %v935 = vmul.f32 %v925, %v934
    %v936 = vrcp.pop %v933
    %v937 = vmul.f32 %v927, %v936
    %938 = vrot.lane.b32.xlu0 %v113, 32
    %v939 = vpop.permute.xlu0 %938
    %940 = vrot.lane.b32.xlu0 %v119, 32
    %v941 = vpop.permute.xlu0 %940
    %v945 = vsel %vm146, %v935, 0
    %v948 = vsel %vm146, %v937, 0
    %950 = vmatprep.subr.mxu0 0.0
    %951 = vmatpush1.msra.mxu0 %v939
    %952 = vmatprep.subr.mxu0 0.0
    %953 = vmatpush1.msra.mxu0 %v941
    %954 = vmatprep.subr.mxu0 0.0
    %955 = vmatpush1.msra.mxu0 0.0
    %956 = vmatprep.subr.mxu0 0.0
    %957 = vmatpush1.msra.mxu0 0.0
    %958 = vmatprep.subr.mxu0 0.0
    %959 = vmatpush1.msra.mxu0 0.0
    %960 = vmatprep.subr.mxu0 0.0
    %961 = vmatpush1.msra.mxu0 0.0
    %962 = vmatprep.subr.mxu0 0.0
    %963 = vmatpush1.msra.mxu0 0.0
    %964 = vmatprep.subr.mxu0 0.0
    %965 = vmatpush1.msra.mxu0 0.0
    %966 = vmatprep.subr.mxu0 0.0
    %967 = vmatpush1.msra.mxu0 0.0
    %968 = vmatprep.subr.mxu0 0.0
    %969 = vmatpush1.msra.mxu0 0.0
    %970 = vmatprep.subr.mxu0 0.0
    %971 = vmatpush1.msra.mxu0 0.0
    %972 = vmatprep.subr.mxu0 0.0
    %973 = vmatpush1.msra.mxu0 0.0
    %974 = vmatprep.subr.mxu0 0.0
    %975 = vmatpush1.msra.mxu0 0.0
    %976 = vmatprep.subr.mxu0 0.0
    %977 = vmatpush1.msra.mxu0 0.0
    %978 = vmatprep.subr.mxu0 0.0
    %979 = vmatpush1.msra.mxu0 0.0
    %980 = vmatprep.subr.mxu0 0.0
    %981 = vmatpush1.msra.mxu0 0.0
    %982 = vmatprep.subr.mxu0 0.0
    %983 = vmatpush1.msra.mxu0 0.0
    %984 = vmatprep.subr.mxu0 0.0
    %985 = vmatpush1.msra.mxu0 0.0
    %986 = vmatprep.subr.mxu0 0.0
    %987 = vmatpush1.msra.mxu0 0.0
    %988 = vmatprep.subr.mxu0 0.0
    %989 = vmatpush1.msra.mxu0 0.0
    %990 = vmatprep.subr.mxu0 0.0
    %991 = vmatpush1.msra.mxu0 0.0
    %992 = vmatprep.subr.mxu0 0.0
    %993 = vmatpush1.msra.mxu0 0.0
    %994 = vmatprep.subr.mxu0 0.0
    %995 = vmatpush1.msra.mxu0 0.0
    %996 = vmatprep.subr.mxu0 0.0
    %997 = vmatpush1.msra.mxu0 0.0
    %998 = vmatprep.subr.mxu0 0.0
    %999 = vmatpush1.msra.mxu0 0.0
    %1000 = vmatprep.subr.mxu0 0.0
    %1001 = vmatpush1.msra.mxu0 0.0
    %1002 = vmatprep.subr.mxu0 0.0
    %1003 = vmatpush1.msra.mxu0 0.0
    %1004 = vmatprep.subr.mxu0 0.0
    %1005 = vmatpush1.msra.mxu0 0.0
    %1006 = vmatprep.subr.mxu0 0.0
    %1007 = vmatpush1.msra.mxu0 0.0
    %1008 = vmatprep.subr.mxu0 0.0
    %1009 = vmatpush1.msra.mxu0 0.0
    %1010 = vmatprep.subr.mxu0 0.0
    %1011 = vmatpush1.msra.mxu0 0.0
    %1012 = vmatprep.subr.mxu0 0.0
    %1013 = vmatpush1.msra.mxu0 0.0
    %1014 = vmatprep.mubr.f32.mxu0 0.0
    %1015 = vmatmul.mubr.f32.gmra.mrb[0].mxu0 %v945
    %v1016 = vpop.f32.mrb[0].mxu0
    %v1017 = vadd.f32 0.0, %v1016
    %v1018 = vpop.f32.mrb[0].mxu0
    %1019 = vmatprep.mubr.f32.mxu0 0.0
    %1020 = vmatmul.mubr.f32.gmra.mrb[0].mxu0 %v948
    %v1021 = vpop.f32.mrb[0].mxu0
    %v1022 = vadd.f32 0.0, %v1021
    %v1023 = vpop.f32.mrb[0].mxu0
    %1024 = vdwg.mxu0
    %1027 = vrot.lane.b32.xlu0 %v1017, 96
    %v1028 = vpop.permute.xlu0 %1027
    %1029 = vrot.lane.b32.xlu0 %v1022, 96
    %v1030 = vpop.permute.xlu0 %1029
    %vm1033 = vcmask 1048320
    %1034 = vst.msk [vmem:[#allocation2] sm:$0xff] %vm1033, %v1028
    %1035 = vst.msk [vmem:[#allocation2 + $0x8] sm:$0xff] %vm1033, %v1030
    %v1036 = vld [vmem:[#allocation2] sm:$0xff]
    %v1037 = vld [vmem:[#allocation2 + $0x8] sm:$0xff]
    %v1038 = vld [vmem:[%s2] sm:$0xff]
    %v1039 = vld [vmem:[%s2 + $0x8] sm:$0xff]
    %v1040 = vld [vmem:[%s2 + $0x10] sm:$0xff]
    %v1041 = vld [vmem:[%s2 + $0x18] sm:$0xff]
    %v1042 = vld [vmem:[%s2 + $0x20] sm:$0xff]
    %v1043 = vld [vmem:[%s2 + $0x28] sm:$0xff]
    %v1044 = vld [vmem:[%s2 + $0x30] sm:$0xff]
    %v1045 = vld [vmem:[%s2 + $0x38] sm:$0xff]
    %v1046 = vld [vmem:[%s2 + $0x40] sm:$0xff]
    %v1047 = vld [vmem:[%s2 + $0x48] sm:$0xff]
    %v1048 = vld [vmem:[%s2 + $0x50] sm:$0xff]
    %v1049 = vld [vmem:[%s2 + $0x58] sm:$0xff]
    %v1050 = vld [vmem:[%s2 + $0x60] sm:$0xff]
    %v1051 = vld [vmem:[%s2 + $0x68] sm:$0xff]
    %v1052 = vld [vmem:[%s2 + $0x70] sm:$0xff]
    %v1053 = vld [vmem:[%s2 + $0x78] sm:$0xff]
    %v1054 = vld [vmem:[%s3] sm:$0x1]
    %v1056 = vlaneseq
    %v1057 = vshrl.u32 %v1056, 7
    %v1058 = vsub.s32 0, %v1057
    %v1059 = vrot.slane %v1054, %v1058
    %1061 = vmatprep.subr.mxu0 0.0
    %1062 = vmatpush1.msra.mxu0 %v1038
    %1063 = vmatprep.subr.mxu0 0.0
    %1064 = vmatpush1.msra.mxu0 %v1039
    %1065 = vmatprep.subr.mxu0 0.0
    %1066 = vmatpush1.msra.mxu0 %v1040
    %1067 = vmatprep.subr.mxu0 0.0
    %1068 = vmatpush1.msra.mxu0 %v1041
    %1069 = vmatprep.subr.mxu0 0.0
    %1070 = vmatpush1.msra.mxu0 %v1042
    %1071 = vmatprep.subr.mxu0 0.0
    %1072 = vmatpush1.msra.mxu0 %v1043
    %1073 = vmatprep.subr.mxu0 0.0
    %1074 = vmatpush1.msra.mxu0 %v1044
    %1075 = vmatprep.subr.mxu0 0.0
    %1076 = vmatpush1.msra.mxu0 %v1045
    %1077 = vmatprep.subr.mxu0 0.0
    %1078 = vmatpush1.msra.mxu0 %v1046
    %1079 = vmatprep.subr.mxu0 0.0
    %1080 = vmatpush1.msra.mxu0 %v1047
    %1081 = vmatprep.subr.mxu0 0.0
    %1082 = vmatpush1.msra.mxu0 %v1048
    %1083 = vmatprep.subr.mxu0 0.0
    %1084 = vmatpush1.msra.mxu0 %v1049
    %1085 = vmatprep.subr.mxu0 0.0
    %1086 = vmatpush1.msra.mxu0 %v1050
    %1087 = vmatprep.subr.mxu0 0.0
    %1088 = vmatpush1.msra.mxu0 %v1051
    %1089 = vmatprep.subr.mxu0 0.0
    %1090 = vmatpush1.msra.mxu0 %v1052
    %1091 = vmatprep.subr.mxu0 0.0
    %1092 = vmatpush1.msra.mxu0 %v1053
    %1093 = vmatprep.subr.mxu0 0.0
    %1094 = vmatpush1.msra.mxu0 0.0
    %1095 = vmatprep.subr.mxu0 0.0
    %1096 = vmatpush1.msra.mxu0 0.0
    %1097 = vmatprep.subr.mxu0 0.0
    %1098 = vmatpush1.msra.mxu0 0.0
    %1099 = vmatprep.subr.mxu0 0.0
    %1100 = vmatpush1.msra.mxu0 0.0
    %1101 = vmatprep.subr.mxu0 0.0
    %1102 = vmatpush1.msra.mxu0 0.0
    %1103 = vmatprep.subr.mxu0 0.0
    %1104 = vmatpush1.msra.mxu0 0.0
    %1105 = vmatprep.subr.mxu0 0.0
    %1106 = vmatpush1.msra.mxu0 0.0
    %1107 = vmatprep.subr.mxu0 0.0
    %1108 = vmatpush1.msra.mxu0 0.0
    %1109 = vmatprep.subr.mxu0 0.0
    %1110 = vmatpush1.msra.mxu0 0.0
    %1111 = vmatprep.subr.mxu0 0.0
    %1112 = vmatpush1.msra.mxu0 0.0
    %1113 = vmatprep.subr.mxu0 0.0
    %1114 = vmatpush1.msra.mxu0 0.0
    %1115 = vmatprep.subr.mxu0 0.0
    %1116 = vmatpush1.msra.mxu0 0.0
    %1117 = vmatprep.subr.mxu0 0.0
    %1118 = vmatpush1.msra.mxu0 0.0
    %1119 = vmatprep.subr.mxu0 0.0
    %1120 = vmatpush1.msra.mxu0 0.0
    %1121 = vmatprep.subr.mxu0 0.0
    %1122 = vmatpush1.msra.mxu0 0.0
    %1123 = vmatprep.subr.mxu0 0.0
    %1124 = vmatpush1.msra.mxu0 0.0
    %1125 = vmatprep.mubr.f32.mxu0 0.0
    %1126 = vmatmul.mubr.f32.gmra.mrb[0].mxu0 %v1036
    %v1127 = vpop.f32.mrb[0].mxu0
    %v1128 = vadd.f32 %v1059, %v1127
    %v1129 = vpop.f32.mrb[0].mxu0
    %1130 = vmatprep.mubr.f32.mxu0 0.0
    %1131 = vmatmul.mubr.f32.gmra.mrb[0].mxu0 %v1037
    %v1132 = vpop.f32.mrb[0].mxu0
    %v1133 = vadd.f32 %v1059, %v1132
    %v1134 = vpop.f32.mrb[0].mxu0
    %1135 = vdwg.mxu0
    %1136 = vst.msk [vmem:[#allocation3] sm:$0xff] %vm37, %v1128
    %1137 = vst.msk [vmem:[#allocation3 + $0x8] sm:$0xff] %vm37, %v1133
    // Predicated region
    $region30: #{multi_head_attention.1} parent=1 // pred_check
      _
    $region31: #{multi_head_attention.1} parent=1 // pred_check_branch
      %1139 = sbr.rel (0) target = $region33
    $region32: #{multi_head_attention.1} parent=1 // pred_region
      %s1141 = ssub.s32 256, 256
      %1142 = vsyncadd [#allocation4], %s1141
      %s1143 = sshll.u32 [#allocation3], 4
      %s1144 = int_to_ptr.vmem [resolvable:$true] %s1143
      %1149 = dma.vmem_to_hbm [thread:$0]  %s1144, 256, %s7, [#allocation4], 128, 128, 8
    $region33: #{multi_head_attention.1} parent=1 // pred_fallthru
      _
    // Predicated region
    $region34: #{multi_head_attention.1} parent=1 // pred_check
      _
    $region35: #{multi_head_attention.1} parent=1 // pred_check_branch
      %1151 = sbr.rel (0) target = $region37
    $region36: #{multi_head_attention.1} parent=1 // pred_region
      %1152 = dma.done [#allocation4], 256
    $region37: #{multi_head_attention.1} parent=1 // pred_fallthru
      _
    %1153 = vsyncpa [#allocation4], 1

</llo_original>
